<compile_context>
chip_gen: v7x
topology: tpu7x:2x2x1
jax: 0.10.0
libtpu: 0.0.40
codegen_flags: <defaults>
</compile_context>

<pallas_src>
import jax
import jax.numpy as jnp
from jax.experimental import pallas as pl
from jax.experimental.pallas import tpu as pltpu

# ---- problem sizes (small, consistent with the module's forward) ----
B, S = 2, 8              # batch, sequence positions of encoded states
D = 32                   # encoded_embedding_dim
C = 16                   # num_classes

ROW_BLOCK = 4096         # rows per grid step once N is large enough to tile


# ----------------------------- kernel ---------------------------------------
def linear_fc_kernel(x_ref, wb_ref, out_ref):
    """out = log_softmax(x @ W + b, axis=-1); W and b packed as wb = [W; b]."""
    d = wb_ref.shape[0] - 1
    x = x_ref[...]                                   # [N, D]   (f32 or bf16)
    w = wb_ref[:d, :]                                # [D, C]   static slice: free
    b = wb_ref[d:, :].astype(jnp.float32)            # [1, C]
    logits = jnp.dot(x, w, preferred_element_type=jnp.float32) + b   # [N, C] f32
    # numerically-stable log-softmax along the class (lane) axis, all in f32
    m = jnp.max(logits, axis=-1, keepdims=True)
    z = logits - m
    lse = jnp.log(jnp.sum(jnp.exp(z), axis=-1, keepdims=True))
    out_ref[...] = z - lse


# ----------------------------- wrapper ---------------------------------------
def init_params(key):
    kw, kb = jax.random.split(key)
    bound = 1.0 / jnp.sqrt(D)
    w = jax.random.uniform(kw, (D, C), jnp.float32, -bound, bound)
    b = jax.random.uniform(kb, (1, C), jnp.float32, -bound, bound)
    # pack bias into the weight slab once, at init: wb = [W; b]  -> (D+1, C)
    return {"wb": jnp.concatenate([w, b], axis=0)}


def linear_fc_forward(params, encoded_state, *, compute_dtype=jnp.float32,
                      row_block=ROW_BLOCK):
    """Mirrors LinearFC.forward (dropout = identity at inference)."""
    orig_shape = encoded_state.shape
    d = orig_shape[-1]
    x2d = encoded_state.reshape(-1, d).astype(compute_dtype)   # [N, D]
    wb = params["wb"].astype(compute_dtype)                    # [D+1, C]
    n = x2d.shape[0]

    if n <= row_block:
        # Gridless: single DMA per operand, no grid-loop / index_map overhead.
        out2d = pl.pallas_call(
            linear_fc_kernel,
            out_shape=jax.ShapeDtypeStruct((n, C), jnp.float32),
            in_specs=[
                pl.BlockSpec(memory_space=pltpu.MemorySpace.VMEM),   # x
                pl.BlockSpec(memory_space=pltpu.MemorySpace.VMEM),   # [W; b]
            ],
            out_specs=pl.BlockSpec(memory_space=pltpu.MemorySpace.VMEM),
        )(x2d, wb)
    else:
        # Row-tiled grid: weights/bias VMEM-resident across steps (constant
        # index_map); "parallel" row axis -> sharded across v7x's 2 TCs
        # (serial loop on v5e/v6e, where it only bounds VMEM).
        n_pad = pl.cdiv(n, row_block) * row_block
        if n_pad != n:
            x2d = jnp.pad(x2d, ((0, n_pad - n), (0, 0)))
        out2d = pl.pallas_call(
            linear_fc_kernel,
            out_shape=jax.ShapeDtypeStruct((n_pad, C), jnp.float32),
            grid=(n_pad // row_block,),
            in_specs=[
                pl.BlockSpec((row_block, d), lambda i: (i, 0)),
                pl.BlockSpec((wb.shape[0], C), lambda i: (0, 0)),
            ],
            out_specs=pl.BlockSpec((row_block, C), lambda i: (i, 0)),
            compiler_params=pltpu.CompilerParams(
                dimension_semantics=("parallel",)),
        )(x2d, wb)
        out2d = out2d[:n]

    return out2d.reshape(*orig_shape[:-1], C)


# ----------------------------- main ------------------------------------------
if __name__ == "__main__":
    key = jax.random.PRNGKey(0)
    pkey, xkey = jax.random.split(key)
    params = init_params(pkey)

    encoded_state = jax.random.normal(xkey, (B, S, D), jnp.float32)

    # pure-JAX reference of the same forward (eval-mode dropout = identity)
    w_ref, b_ref = params["wb"][:D], params["wb"][D:]
    ref = jax.nn.log_softmax(
        encoded_state.reshape(-1, D) @ w_ref + b_ref, axis=-1
    ).reshape(B, S, C)

    # 1) gridless f32 path (the shipped configuration at this size)
    out = linear_fc_forward(params, encoded_state)
    jax.block_until_ready(out)
    assert out.shape == (B, S, C) and out.dtype == jnp.float32
    assert bool(jnp.all(jnp.isfinite(out)))
    row_sums = jnp.sum(jnp.exp(out), axis=-1)
    assert bool(jnp.all(jnp.abs(row_sums - 1.0) < 1e-5))
    assert bool(jnp.allclose(out, ref, atol=1e-5, rtol=1e-5))

    # 2) gridless bf16-input path (DMA-halving lever for the batched regime)
    out_bf16 = linear_fc_forward(params, encoded_state,
                                 compute_dtype=jnp.bfloat16)
    jax.block_until_ready(out_bf16)
    assert bool(jnp.all(jnp.abs(jnp.sum(jnp.exp(out_bf16), axis=-1) - 1.0) < 1e-5))
    assert bool(jnp.allclose(out_bf16, ref, atol=3e-2, rtol=3e-2))

    # 3) row-tiled path (forced with a tiny row block) — validates the scaled
    #    grid/"parallel" configuration used once N grows.
    out_tiled = linear_fc_forward(params, encoded_state, row_block=8)
    jax.block_until_ready(out_tiled)
    assert bool(jnp.allclose(out_tiled, ref, atol=1e-5, rtol=1e-5))

    print("KERNEL_OK")
</pallas_src>

<mosaic_0001>
module attributes {stable_mosaic.version = 11 : i64} {
  func.func @linear_fc_kernel(%arg0: memref<16x32xf32, #tpu.memory_space<vmem>>, %arg1: memref<33x16xf32, #tpu.memory_space<vmem>>, %arg2: memref<16x16xf32, #tpu.memory_space<vmem>>) attributes {dimension_semantics = [], scalar_prefetch = 0 : i64, scratch_operands = 0 : i64, tpu.core_type = #tpu.core_type<tc>} {
    %c0 = arith.constant 0 : index
    %c0_0 = arith.constant 0 : index
    %0 = vector.load %arg0[%c0, %c0_0] : memref<16x32xf32, #tpu.memory_space<vmem>>, vector<16x32xf32>
    %c0_1 = arith.constant 0 : index
    %c0_2 = arith.constant 0 : index
    %1 = vector.load %arg1[%c0_1, %c0_2] : memref<33x16xf32, #tpu.memory_space<vmem>>, vector<32x16xf32>
    %c32 = arith.constant 32 : index
    %c0_3 = arith.constant 0 : index
    %2 = vector.load %arg1[%c32, %c0_3] : memref<33x16xf32, #tpu.memory_space<vmem>>, vector<1x16xf32>
    %cst = arith.constant dense<0.000000e+00> : vector<16x16xf32>
    %3 = tpu.matmul %0, %1, %cst {dimension_numbers = #tpu.dot_dimension_numbers<[1], [0], [0], [1], [0, 0, 1, 1], [], []>} : vector<16x32xf32>, vector<32x16xf32>, vector<16x16xf32> -> vector<16x16xf32>
    %4 = vector.broadcast %2 : vector<1x16xf32> to vector<16x16xf32>
    %5 = arith.addf %3, %4 : vector<16x16xf32>
    %cst_4 = arith.constant dense<0xFF800000> : vector<16xf32>
    %6 = vector.multi_reduction <maximumf>, %5, %cst_4 [1] : vector<16x16xf32> to vector<16xf32>
    %7 = vector.shape_cast %6 : vector<16xf32> to vector<16x1xf32>
    %8 = vector.broadcast %7 : vector<16x1xf32> to vector<16x16xf32>
    %9 = arith.subf %5, %8 : vector<16x16xf32>
    %10 = math.exp %9 : vector<16x16xf32>
    %cst_5 = arith.constant dense<0.000000e+00> : vector<16xf32>
    %11 = vector.multi_reduction <add>, %10, %cst_5 [1] : vector<16x16xf32> to vector<16xf32>
    %12 = vector.shape_cast %11 : vector<16xf32> to vector<16x1xf32>
    %13 = math.log %12 : vector<16x1xf32>
    %14 = vector.broadcast %13 : vector<16x1xf32> to vector<16x16xf32>
    %15 = arith.subf %9, %14 : vector<16x16xf32>
    %c0_6 = arith.constant 0 : index
    %c0_7 = arith.constant 0 : index
    %16 = vector.load %arg2[%c0_6, %c0_7] : memref<16x16xf32, #tpu.memory_space<vmem>>, vector<16x16xf32>
    tpu.vector_store %arg2[%c0_6, %c0_7], %15 {strides = array<i32>} : memref<16x16xf32, #tpu.memory_space<vmem>>, vector<16x16xf32>,
    return
  }
}

</mosaic_0001>

<llo_original>
// kernel: tpu_custom_call.1
$region0: #{tpu_custom_call.1}
  #allocation0 [shape = 'u32[]', space=smem, size = 0x4, offset = 0x4, fixed_abs, tag = 'smem constant byte address 0x4 - core index']
  #allocation1 [shape = 'u32[144,128]{1,0:T(1,128)}', space=vmem, size = 0x12000, scoped, tag = 'internal scratch']
  %s0 = inlined_call_operand.vmem [shape: f32[16,32], index: 0, kind: input, shape index: {}]
  %s1 = inlined_call_operand.vmem [shape: f32[33,16], index: 1, kind: input, shape index: {}]
  %s2 = inlined_call_operand.hbm [shape: f32[16,16], index: 2, kind: output, shape index: {}]
  %s3 = sld [smem:[#allocation0]]
  $region18: #{tpu_custom_call.1} parent=0
    _
  %s5 = ssub.s32 1, %s3
  %s6 = scalar_select 0, %s5, %s3
  $region1: #{tpu_custom_call.1} parent=0
    #allocation2 [shape = 'u8[8192]{0}', space=vmem, size = 0x2000, scoped, tag = 'output window, operand 0, single buffered']
    #allocation3 [shape = 's32[1]{0}', space=sflag, size = 0x4, scoped, tag = 'scoped memory for tpu_custom_call.1']
    %7 = vsyncpa [#allocation3], 0
    // Predicated region
    $region2: #{tpu_custom_call.1} parent=1 // pred_check
      _
    $region3: #{tpu_custom_call.1} parent=1 // pred_check_branch
      %9 = sbr.rel (0) target = $region5
    $region4: #{tpu_custom_call.1} parent=1 // pred_region
      _
    $region5: #{tpu_custom_call.1} parent=1 // pred_fallthru
      _
    // Predicated region
    $region6: #{tpu_custom_call.1} parent=1 // pred_check
      _
    $region7: #{tpu_custom_call.1} parent=1 // pred_check_branch
      %11 = sbr.rel (0) target = $region9
    $region8: #{tpu_custom_call.1} parent=1 // pred_region
      _
    $region9: #{tpu_custom_call.1} parent=1 // pred_fallthru
      _
    %v12 = vld [vmem:[%s0] sm:$0xff]
    %v13 = vld [vmem:[%s0 + $0x8] sm:$0xff]
    %v14 = vld [vmem:[%s1] sm:$0xff]
    %v15 = vld [vmem:[%s1 + $0x8] sm:$0xff]
    %v16 = vld [vmem:[%s1 + $0x10] sm:$0xff]
    %v17 = vld [vmem:[%s1 + $0x18] sm:$0xff]
    %v18 = vld [vmem:[%s1 + $0x20] sm:$0x1]
    %v19 = vlaneseq
    %v20 = vshrl.u32 %v19, 7
    %v21 = vsub.s32 0, %v20
    %v22 = vrot.slane %v18, %v21
    %vm23 = vcmask 261120
    %v25 = vsel %vm23, %v12, 0
    %v28 = vsel %vm23, %v13, 0
    %30 = vmatprep.subr.mxu0 0.0
    %31 = vmatpush1.msra.mxu0 %v14
    %32 = vmatprep.subr.mxu0 0.0
    %33 = vmatpush1.msra.mxu0 %v15
    %34 = vmatprep.subr.mxu0 0.0
    %35 = vmatpush1.msra.mxu0 %v16
    %36 = vmatprep.subr.mxu0 0.0
    %37 = vmatpush1.msra.mxu0 %v17
    %38 = vmatprep.subr.mxu0 0.0
    %39 = vmatpush1.msra.mxu0 0.0
    %40 = vmatprep.subr.mxu0 0.0
    %41 = vmatpush1.msra.mxu0 0.0
    %42 = vmatprep.subr.mxu0 0.0
    %43 = vmatpush1.msra.mxu0 0.0
    %44 = vmatprep.subr.mxu0 0.0
    %45 = vmatpush1.msra.mxu0 0.0
    %46 = vmatprep.subr.mxu0 0.0
    %47 = vmatpush1.msra.mxu0 0.0
    %48 = vmatprep.subr.mxu0 0.0
    %49 = vmatpush1.msra.mxu0 0.0
    %50 = vmatprep.subr.mxu0 0.0
    %51 = vmatpush1.msra.mxu0 0.0
    %52 = vmatprep.subr.mxu0 0.0
    %53 = vmatpush1.msra.mxu0 0.0
    %54 = vmatprep.subr.mxu0 0.0
    %55 = vmatpush1.msra.mxu0 0.0
    %56 = vmatprep.subr.mxu0 0.0
    %57 = vmatpush1.msra.mxu0 0.0
    %58 = vmatprep.subr.mxu0 0.0
    %59 = vmatpush1.msra.mxu0 0.0
    %60 = vmatprep.subr.mxu0 0.0
    %61 = vmatpush1.msra.mxu0 0.0
    %62 = vmatprep.subr.mxu0 0.0
    %63 = vmatpush1.msra.mxu0 0.0
    %64 = vmatprep.subr.mxu0 0.0
    %65 = vmatpush1.msra.mxu0 0.0
    %66 = vmatprep.subr.mxu0 0.0
    %67 = vmatpush1.msra.mxu0 0.0
    %68 = vmatprep.subr.mxu0 0.0
    %69 = vmatpush1.msra.mxu0 0.0
    %70 = vmatprep.subr.mxu0 0.0
    %71 = vmatpush1.msra.mxu0 0.0
    %72 = vmatprep.subr.mxu0 0.0
    %73 = vmatpush1.msra.mxu0 0.0
    %74 = vmatprep.subr.mxu0 0.0
    %75 = vmatpush1.msra.mxu0 0.0
    %76 = vmatprep.subr.mxu0 0.0
    %77 = vmatpush1.msra.mxu0 0.0
    %78 = vmatprep.subr.mxu0 0.0
    %79 = vmatpush1.msra.mxu0 0.0
    %80 = vmatprep.subr.mxu0 0.0
    %81 = vmatpush1.msra.mxu0 0.0
    %82 = vmatprep.subr.mxu0 0.0
    %83 = vmatpush1.msra.mxu0 0.0
    %84 = vmatprep.subr.mxu0 0.0
    %85 = vmatpush1.msra.mxu0 0.0
    %86 = vmatprep.subr.mxu0 0.0
    %87 = vmatpush1.msra.mxu0 0.0
    %88 = vmatprep.subr.mxu0 0.0
    %89 = vmatpush1.msra.mxu0 0.0
    %90 = vmatprep.subr.mxu0 0.0
    %91 = vmatpush1.msra.mxu0 0.0
    %92 = vmatprep.subr.mxu0 0.0
    %93 = vmatpush1.msra.mxu0 0.0
    %94 = vmatprep.mubr.f32.mxu0 0.0
    %95 = vmatmul.mubr.f32.gmra.mrb[0].mxu0 %v25
    %v96 = vpop.f32.mrb[0].mxu0
    %v97 = vadd.f32 %v22, %v96
    %v98 = vpop.f32.mrb[0].mxu0
    %99 = vmatprep.mubr.f32.mxu0 0.0
    %100 = vmatmul.mubr.f32.gmra.mrb[0].mxu0 %v28
    %v101 = vpop.f32.mrb[0].mxu0
    %v102 = vadd.f32 %v22, %v101
    %v103 = vpop.f32.mrb[0].mxu0
    %104 = vdwg.mxu0
    %vm105 = vcmask 130048
    %v106 = vsel %vm105, %v97, -inf
    %107 = vmax.xlane.f32.xlu0 %v106
    %v108 = vpop.xlane.xlu0 %107
    %v109 = vsel %vm105, %v102, -inf
    %110 = vmax.xlane.f32.xlu0 %v109
    %v111 = vpop.xlane.xlu0 %110
    %v112 = vsub.f32 %v97, %v108
    %v113 = vsub.f32 %v102, %v111
    %v114 = vmul.f32 %v112, 1.442695
    %v115 = vpow.pop %v114
    %v116 = vmul.f32 %v113, 1.442695
    %v117 = vpow.pop %v116
    %v118 = vsel %vm105, %v115, 0.0
    %119 = vadd.xlane.f32.xlu0 %v118
    %v120 = vpop.xlane.xlu0 %119
    %v121 = vsel %vm105, %v117, 0.0
    %122 = vadd.xlane.f32.xlu0 %v121
    %v123 = vpop.xlane.xlu0 %122
    %v124 = vlog2.pop %v120
    %v125 = vmul.f32 %v124, 0.6931472
    %v126 = vlog2.pop %v123
    %v127 = vmul.f32 %v126, 0.6931472
    %v128 = vsub.f32 %v112, %v125
    %v129 = vsub.f32 %v113, %v127
    %130 = vst.msk [vmem:[#allocation2] sm:$0xff] %vm105, %v128
    %131 = vst.msk [vmem:[#allocation2 + $0x8] sm:$0xff] %vm105, %v129
    // Predicated region
    $region10: #{tpu_custom_call.1} parent=1 // pred_check
      _
    $region11: #{tpu_custom_call.1} parent=1 // pred_check_branch
      %133 = sbr.rel (0) target = $region13
    $region12: #{tpu_custom_call.1} parent=1 // pred_region
      %s135 = ssub.s32 256, 256
      %136 = vsyncadd [#allocation3], %s135
      %s137 = sshll.u32 [#allocation2], 4
      %s138 = int_to_ptr.vmem [resolvable:$true] %s137
      %143 = dma.vmem_to_hbm [thread:$0]  %s138, 256, %s2, [#allocation3], 128, 128, 8
    $region13: #{tpu_custom_call.1} parent=1 // pred_fallthru
      _
    // Predicated region
    $region14: #{tpu_custom_call.1} parent=1 // pred_check
      _
    $region15: #{tpu_custom_call.1} parent=1 // pred_check_branch
      %145 = sbr.rel (0) target = $region17
    $region16: #{tpu_custom_call.1} parent=1 // pred_region
      %146 = dma.done [#allocation3], 256
    $region17: #{tpu_custom_call.1} parent=1 // pred_fallthru
      _
    %147 = vsyncpa [#allocation3], 1

</llo_original>
